<compile_context>
chip_gen: v7x
topology: tpu7x:2x2x1
jax: 0.10.0
libtpu: 0.0.40
codegen_flags: <defaults>
</compile_context>

<pallas_src>
import functools

import jax
import jax.numpy as jnp
from jax.experimental import pallas as pl
from jax.experimental.pallas import tpu as pltpu

IN_DIM = 2
H1 = 128
H2 = 64
OUT_DIM = 1

LANE = 128  # batch lives in the lane (last) dim -> tiles must be multiples of 128


def _round_up(v, m):
    return ((v + m - 1) // m) * m


def _mlp_kernel(x_ref, w1_ref, b1_ref, w2_ref, b2_ref, w3_ref, b3_ref, o_ref):
    # Transposed (lanes = batch) layout: every operand/result tile is lane-dense.
    x = x_ref[...]                                        # (2, tb)   f32
    w1 = w1_ref[...]                                      # (128, 2)  native (out, in)

    # Layer 1: two rank-1 broadcast multiply-adds on the VPU (avoids a K=2 matmul).
    h1 = (w1[:, 0:1] * x[0:1, :]
          + w1[:, 1:2] * x[1:2, :]
          + b1_ref[...])                                  # (128, tb)
    h1 = jnp.maximum(h1, 0.0)

    # Layer 2: (64,128) @ (128,tb) -> (64,tb), K=128 MXU matmul.
    h2 = jnp.dot(w2_ref[...], h1,
                 preferred_element_type=jnp.float32) + b2_ref[...]
    h2 = jnp.maximum(h2, 0.0)                             # (64, tb)

    # Layer 3: (1,64) @ (64,tb) -> (1,tb).
    out = jnp.dot(w3_ref[...], h2,
                  preferred_element_type=jnp.float32) + b3_ref[...]
    o_ref[...] = out.astype(o_ref.dtype)                  # (1, tb)  lane-dense store


def prepare_params(params):
    """Reshape the PyTorch-layout params ONCE (hoisted out of the per-call path).

    PyTorch nn.Linear stores W as (out_features, in_features); the transposed kernel
    computes W @ x^T, so the native layout is used directly.  Biases become column
    vectors so they broadcast along the lane (batch) dim.
    """
    w1 = params["w1"].astype(jnp.float32)              # (128, 2)
    w2 = params["w2"].astype(jnp.float32)              # (64, 128)
    w3 = params["w3"].astype(jnp.float32)              # (1, 64)
    b1 = params["b1"].astype(jnp.float32)[:, None]     # (128, 1)
    b2 = params["b2"].astype(jnp.float32)[:, None]     # (64, 1)
    b3 = params["b3"].astype(jnp.float32)[:, None]     # (1, 1)
    return (w1, b1, w2, b2, w3, b3)


@functools.partial(jax.jit, static_argnames=("tile_b",))
def mlp_regressor_forward(x, padded_params, tile_b=8192):
    """x: (B, IN_DIM) float32. padded_params: output of prepare_params().
    Returns (B, OUT_DIM) float32."""
    w1, b1, w2, b2, w3, b3 = padded_params
    B = x.shape[0]

    # Batch tile: multiple of 128 (lane dim), at most the rounded batch.
    tb_req = _round_up(max(int(tile_b), 1), LANE)
    b_min = _round_up(B, LANE)
    tb = min(tb_req, b_min)
    # v7x megacore: prefer >= 2 grid steps when the batch is big enough to split.
    if tb >= b_min and b_min >= 2 * LANE:
        tb = _round_up(b_min // 2, LANE)
    Bp = pl.cdiv(B, tb) * tb
    grid = (Bp // tb,)

    # Transpose + pad batch: (B, 2) -> (2, Bp).  Zero padding is mathematically
    # inert and padded columns are sliced off below.
    xt = jnp.pad(x.astype(jnp.float32).T, ((0, 0), (0, Bp - B)))

    flops = 2 * Bp * (IN_DIM * H1 + H1 * H2 + H2 * OUT_DIM)
    bytes_accessed = 4 * (Bp * IN_DIM + Bp * OUT_DIM
                          + H1 * IN_DIM + H2 * H1 + OUT_DIM * H2
                          + H1 + H2 + OUT_DIM)

    out_t = pl.pallas_call(
        _mlp_kernel,
        out_shape=jax.ShapeDtypeStruct((OUT_DIM, Bp), jnp.float32),
        grid=grid,
        in_specs=[
            pl.BlockSpec((IN_DIM, tb), lambda i: (0, i)),     # x^T: batch-tiled, pipelined
            pl.BlockSpec((H1, IN_DIM), lambda i: (0, 0)),     # w1: VMEM-resident
            pl.BlockSpec((H1, 1), lambda i: (0, 0)),          # b1
            pl.BlockSpec((H2, H1), lambda i: (0, 0)),         # w2
            pl.BlockSpec((H2, 1), lambda i: (0, 0)),          # b2
            pl.BlockSpec((OUT_DIM, H2), lambda i: (0, 0)),    # w3
            pl.BlockSpec((OUT_DIM, 1), lambda i: (0, 0)),     # b3
        ],
        out_specs=pl.BlockSpec((OUT_DIM, tb), lambda i: (0, i)),
        compiler_params=pltpu.CompilerParams(
            dimension_semantics=("parallel",)),               # shard batch over TCs
        cost_estimate=pl.CostEstimate(
            flops=flops, transcendentals=0, bytes_accessed=bytes_accessed),
    )(xt, w1, b1, w2, b2, w3, b3)

    return out_t[:, :B].T  # (B, 1)


def init_params(key):
    """Deterministic init mimicking PyTorch nn.Linear default (U(-1/sqrt(fan_in), +))."""
    def linear(k, fan_in, fan_out):
        kw, kb = jax.random.split(k)
        bound = 1.0 / jnp.sqrt(fan_in)
        w = jax.random.uniform(kw, (fan_out, fan_in), jnp.float32, -bound, bound)
        b = jax.random.uniform(kb, (fan_out,), jnp.float32, -bound, bound)
        return w, b

    k1, k2, k3 = jax.random.split(key, 3)
    w1, b1 = linear(k1, IN_DIM, H1)
    w2, b2 = linear(k2, H1, H2)
    w3, b3 = linear(k3, H2, OUT_DIM)
    return {"w1": w1, "b1": b1, "w2": w2, "b2": b2, "w3": w3, "b3": b3}


def _reference(x, p):
    h1 = jnp.maximum(x @ p["w1"].T + p["b1"], 0.0)
    h2 = jnp.maximum(h1 @ p["w2"].T + p["b2"], 0.0)
    return h2 @ p["w3"].T + p["b3"]


if __name__ == "__main__":
    key = jax.random.PRNGKey(0)
    kx, kx2, kp = jax.random.split(key, 3)

    params = init_params(kp)
    padded = prepare_params(params)  # hoisted: done once, reused for every forward

    # Small primary check (single grid step).
    B = 8
    x = jax.random.normal(kx, (B, IN_DIM), dtype=jnp.float32)
    out = jax.block_until_ready(mlp_regressor_forward(x, padded))
    ref = _reference(x, params)
    assert out.shape == (B, OUT_DIM), out.shape
    assert jnp.allclose(out, ref, atol=1e-4, rtol=1e-4)

    # Exercise the batch-tiled path (multiple grid steps + ragged batch padding).
    B2 = 300
    x2 = jax.random.normal(kx2, (B2, IN_DIM), dtype=jnp.float32)
    out2 = jax.block_until_ready(mlp_regressor_forward(x2, padded, tile_b=128))
    ref2 = _reference(x2, params)
    assert out2.shape == (B2, OUT_DIM), out2.shape
    assert jnp.allclose(out2, ref2, atol=1e-4, rtol=1e-4)

    print("KERNEL_OK")
</pallas_src>

<mosaic_0001>
module attributes {stable_mosaic.version = 11 : i64} {
  func.func @_mlp_kernel(%arg0: i32, %arg1: memref<2x128xf32, #tpu.memory_space<vmem>>, %arg2: memref<128x2xf32, #tpu.memory_space<vmem>>, %arg3: memref<128x1xf32, #tpu.memory_space<vmem>>, %arg4: memref<64x128xf32, #tpu.memory_space<vmem>>, %arg5: memref<64x1xf32, #tpu.memory_space<vmem>>, %arg6: memref<1x64xf32, #tpu.memory_space<vmem>>, %arg7: memref<1x1xf32, #tpu.memory_space<vmem>>, %arg8: memref<1x128xf32, #tpu.memory_space<vmem>>) attributes {dimension_semantics = [#tpu.dimension_semantics<parallel>], iteration_bounds = array<i64: 1>, scalar_prefetch = 0 : i64, scratch_operands = 0 : i64, tpu.core_type = #tpu.core_type<tc>, window_params = [{transform_indices = @transform_0, window_bounds = array<i64: 2, 128>}, {pipeline_mode = #tpu.pipeline_mode<synchronous>, transform_indices = @transform_1, window_bounds = array<i64: 128, 2>}, {pipeline_mode = #tpu.pipeline_mode<synchronous>, transform_indices = @transform_2, window_bounds = array<i64: 128, 1>}, {pipeline_mode = #tpu.pipeline_mode<synchronous>, transform_indices = @transform_3, window_bounds = array<i64: 64, 128>}, {pipeline_mode = #tpu.pipeline_mode<synchronous>, transform_indices = @transform_4, window_bounds = array<i64: 64, 1>}, {pipeline_mode = #tpu.pipeline_mode<synchronous>, transform_indices = @transform_5, window_bounds = array<i64: 1, 64>}, {pipeline_mode = #tpu.pipeline_mode<synchronous>, transform_indices = @transform_6, window_bounds = array<i64: 1, 1>}, {transform_indices = @transform_7, window_bounds = array<i64: 1, 128>}]} {
    %c0 = arith.constant 0 : index
    %c0_0 = arith.constant 0 : index
    %0 = vector.load %arg1[%c0, %c0_0] : memref<2x128xf32, #tpu.memory_space<vmem>>, vector<2x128xf32>
    %c0_1 = arith.constant 0 : index
    %c0_2 = arith.constant 0 : index
    %1 = vector.load %arg2[%c0_1, %c0_2] : memref<128x2xf32, #tpu.memory_space<vmem>>, vector<128x2xf32>
    %2 = vector.extract_strided_slice %1 {offsets = [0, 0], sizes = [128, 1], strides = [1, 1]} : vector<128x2xf32> to vector<128x1xf32>
    %3 = vector.extract_strided_slice %0 {offsets = [0, 0], sizes = [1, 128], strides = [1, 1]} : vector<2x128xf32> to vector<1x128xf32>
    %4 = vector.broadcast %2 : vector<128x1xf32> to vector<128x128xf32>
    %5 = vector.broadcast %3 : vector<1x128xf32> to vector<128x128xf32>
    %6 = arith.mulf %4, %5 : vector<128x128xf32>
    %7 = vector.extract_strided_slice %1 {offsets = [0, 1], sizes = [128, 1], strides = [1, 1]} : vector<128x2xf32> to vector<128x1xf32>
    %8 = vector.extract_strided_slice %0 {offsets = [1, 0], sizes = [1, 128], strides = [1, 1]} : vector<2x128xf32> to vector<1x128xf32>
    %9 = vector.broadcast %7 : vector<128x1xf32> to vector<128x128xf32>
    %10 = vector.broadcast %8 : vector<1x128xf32> to vector<128x128xf32>
    %11 = arith.mulf %9, %10 : vector<128x128xf32>
    %12 = arith.addf %6, %11 : vector<128x128xf32>
    %c0_3 = arith.constant 0 : index
    %c0_4 = arith.constant 0 : index
    %13 = vector.load %arg3[%c0_3, %c0_4] : memref<128x1xf32, #tpu.memory_space<vmem>>, vector<128x1xf32>
    %14 = vector.broadcast %13 : vector<128x1xf32> to vector<128x128xf32>
    %15 = arith.addf %12, %14 : vector<128x128xf32>
    %cst = arith.constant 0.000000e+00 : f32
    %16 = vector.broadcast %cst : f32 to vector<128x128xf32>
    %17 = arith.maximumf %15, %16 : vector<128x128xf32>
    %c0_5 = arith.constant 0 : index
    %c0_6 = arith.constant 0 : index
    %18 = vector.load %arg4[%c0_5, %c0_6] : memref<64x128xf32, #tpu.memory_space<vmem>>, vector<64x128xf32>
    %cst_7 = arith.constant dense<0.000000e+00> : vector<64x128xf32>
    %19 = tpu.matmul %18, %17, %cst_7 {dimension_numbers = #tpu.dot_dimension_numbers<[1], [0], [0], [1], [0, 0, 1, 1], [], []>} : vector<64x128xf32>, vector<128x128xf32>, vector<64x128xf32> -> vector<64x128xf32>
    %c0_8 = arith.constant 0 : index
    %c0_9 = arith.constant 0 : index
    %20 = vector.load %arg5[%c0_8, %c0_9] : memref<64x1xf32, #tpu.memory_space<vmem>>, vector<64x1xf32>
    %21 = vector.broadcast %20 : vector<64x1xf32> to vector<64x128xf32>
    %22 = arith.addf %19, %21 : vector<64x128xf32>
    %cst_10 = arith.constant 0.000000e+00 : f32
    %23 = vector.broadcast %cst_10 : f32 to vector<64x128xf32>
    %24 = arith.maximumf %22, %23 : vector<64x128xf32>
    %c0_11 = arith.constant 0 : index
    %c0_12 = arith.constant 0 : index
    %25 = vector.load %arg6[%c0_11, %c0_12] : memref<1x64xf32, #tpu.memory_space<vmem>>, vector<1x64xf32>
    %cst_13 = arith.constant dense<0.000000e+00> : vector<1x128xf32>
    %26 = tpu.matmul %25, %24, %cst_13 {dimension_numbers = #tpu.dot_dimension_numbers<[1], [0], [0], [1], [0, 0, 1, 1], [], []>} : vector<1x64xf32>, vector<64x128xf32>, vector<1x128xf32> -> vector<1x128xf32>
    %c0_14 = arith.constant 0 : index
    %c0_15 = arith.constant 0 : index
    %27 = vector.load %arg7[%c0_14, %c0_15] : memref<1x1xf32, #tpu.memory_space<vmem>>, vector<1x1xf32>
    %28 = vector.broadcast %27 : vector<1x1xf32> to vector<1x128xf32>
    %29 = arith.addf %26, %28 : vector<1x128xf32>
    %c0_16 = arith.constant 0 : index
    %c0_17 = arith.constant 0 : index
    %30 = vector.load %arg8[%c0_16, %c0_17] : memref<1x128xf32, #tpu.memory_space<vmem>>, vector<1x128xf32>
    tpu.vector_store %arg8[%c0_16, %c0_17], %29 {strides = array<i32>} : memref<1x128xf32, #tpu.memory_space<vmem>>, vector<1x128xf32>,
    return
  }
  func.func @transform_0(%arg0: i32) -> (i32, i32) {
    %c0_i32 = arith.constant 0 : i32
    %c0_i32_0 = arith.constant 0 : i32
    return %c0_i32, %arg0 : i32, i32
  }
  func.func @transform_1(%arg0: i32) -> (i32, i32) {
    %c0_i32 = arith.constant 0 : i32
    %c0_i32_0 = arith.constant 0 : i32
    %c0_i32_1 = arith.constant 0 : i32
    return %c0_i32, %c0_i32_0 : i32, i32
  }
  func.func @transform_2(%arg0: i32) -> (i32, i32) {
    %c0_i32 = arith.constant 0 : i32
    %c0_i32_0 = arith.constant 0 : i32
    %c0_i32_1 = arith.constant 0 : i32
    return %c0_i32, %c0_i32_0 : i32, i32
  }
  func.func @transform_3(%arg0: i32) -> (i32, i32) {
    %c0_i32 = arith.constant 0 : i32
    %c0_i32_0 = arith.constant 0 : i32
    %c0_i32_1 = arith.constant 0 : i32
    return %c0_i32, %c0_i32_0 : i32, i32
  }
  func.func @transform_4(%arg0: i32) -> (i32, i32) {
    %c0_i32 = arith.constant 0 : i32
    %c0_i32_0 = arith.constant 0 : i32
    %c0_i32_1 = arith.constant 0 : i32
    return %c0_i32, %c0_i32_0 : i32, i32
  }
  func.func @transform_5(%arg0: i32) -> (i32, i32) {
    %c0_i32 = arith.constant 0 : i32
    %c0_i32_0 = arith.constant 0 : i32
    %c0_i32_1 = arith.constant 0 : i32
    return %c0_i32, %c0_i32_0 : i32, i32
  }
  func.func @transform_6(%arg0: i32) -> (i32, i32) {
    %c0_i32 = arith.constant 0 : i32
    %c0_i32_0 = arith.constant 0 : i32
    %c0_i32_1 = arith.constant 0 : i32
    return %c0_i32, %c0_i32_0 : i32, i32
  }
  func.func @transform_7(%arg0: i32) -> (i32, i32) {
    %c0_i32 = arith.constant 0 : i32
    %c0_i32_0 = arith.constant 0 : i32
    return %c0_i32, %arg0 : i32, i32
  }
}

</mosaic_0001>

<llo_original>
// kernel: mlp_regressor_forward.1
$region0: #{mlp_regressor_forward.1}
  #allocation0 [shape = 'u32[]', space=smem, size = 0x4, offset = 0x4, fixed_abs, tag = 'smem constant byte address 0x4 - core index']
  #allocation1 [shape = 'u32[144,128]{1,0:T(1,128)}', space=vmem, size = 0x12000, scoped, tag = 'internal scratch']
  #allocation2 [shape = 'f32[1,1]{1,0:T(1,128)S(1)}', space=vmem, size = 0x200, scoped, tag = 'scoped memory for mlp_regressor_forward.1']
  %s0 = inlined_call_operand.vmem [shape: f32[2,128], index: 0, kind: input, shape index: {}]
  %s1 = inlined_call_operand.vmem [shape: f32[128,2], index: 1, kind: input, shape index: {}]
  %s2 = inlined_call_operand.vmem [shape: f32[128,1], index: 2, kind: input, shape index: {}]
  %s3 = inlined_call_operand.vmem [shape: f32[64,128], index: 3, kind: input, shape index: {}]
  %s4 = inlined_call_operand.vmem [shape: f32[64,1], index: 4, kind: input, shape index: {}]
  %s5 = inlined_call_operand.vmem [shape: f32[1,64], index: 5, kind: input, shape index: {}]
  %s6 = inlined_call_operand.<no memory space> [shape: f32[1,1], index: 6, kind: input, shape index: {}]
  %s7 = inlined_call_operand.vmem [shape: f32[1,128], index: 7, kind: output, shape index: {}]
  %s8 = sld [smem:[#allocation0]]
  $region38: #{mlp_regressor_forward.1} parent=0
    _
  %s10 = ssub.s32 1, %s8
  %s11 = scalar_select 0, %s10, %s8
  %v12 = vstv %s6
  %13 = vst [vmem:[#allocation2] sm:$0x1] %v12
  // Predicated region
  $region2: #{mlp_regressor_forward.1} parent=0 // pred_check
    _
  $region3: #{mlp_regressor_forward.1} parent=0 // pred_check_branch
    %15 = sbr.rel (0) target = $region5
  $region4: #{mlp_regressor_forward.1} parent=0 // pred_region
    _
  $region5: #{mlp_regressor_forward.1} parent=0 // pred_fallthru
    _
  // Predicated region
  $region6: #{mlp_regressor_forward.1} parent=0 // pred_check
    _
  $region7: #{mlp_regressor_forward.1} parent=0 // pred_check_branch
    %17 = sbr.rel (0) target = $region9
  $region8: #{mlp_regressor_forward.1} parent=0 // pred_region
    _
  $region9: #{mlp_regressor_forward.1} parent=0 // pred_fallthru
    _
  // Predicated region
  $region10: #{mlp_regressor_forward.1} parent=0 // pred_check
    _
  $region11: #{mlp_regressor_forward.1} parent=0 // pred_check_branch
    %19 = sbr.rel (0) target = $region13
  $region12: #{mlp_regressor_forward.1} parent=0 // pred_region
    _
  $region13: #{mlp_regressor_forward.1} parent=0 // pred_fallthru
    _
  // Predicated region
  $region14: #{mlp_regressor_forward.1} parent=0 // pred_check
    _
  $region15: #{mlp_regressor_forward.1} parent=0 // pred_check_branch
    %21 = sbr.rel (0) target = $region17
  $region16: #{mlp_regressor_forward.1} parent=0 // pred_region
    _
  $region17: #{mlp_regressor_forward.1} parent=0 // pred_fallthru
    _
  // Predicated region
  $region18: #{mlp_regressor_forward.1} parent=0 // pred_check
    _
  $region19: #{mlp_regressor_forward.1} parent=0 // pred_check_branch
    %23 = sbr.rel (0) target = $region21
  $region20: #{mlp_regressor_forward.1} parent=0 // pred_region
    _
  $region21: #{mlp_regressor_forward.1} parent=0 // pred_fallthru
    _
  // Predicated region
  $region22: #{mlp_regressor_forward.1} parent=0 // pred_check
    _
  $region23: #{mlp_regressor_forward.1} parent=0 // pred_check_branch
    %25 = sbr.rel (0) target = $region25
  $region24: #{mlp_regressor_forward.1} parent=0 // pred_region
    _
  $region25: #{mlp_regressor_forward.1} parent=0 // pred_fallthru
    _
  // Predicated region
  $region26: #{mlp_regressor_forward.1} parent=0 // pred_check
    _
  $region27: #{mlp_regressor_forward.1} parent=0 // pred_check_branch
    %27 = sbr.rel (0) target = $region29
  $region28: #{mlp_regressor_forward.1} parent=0 // pred_region
    _
  $region29: #{mlp_regressor_forward.1} parent=0 // pred_fallthru
    _
  %v28 = vld [vmem:[%s0] sm:$0x3]
  %v29 = vld [vmem:[%s1] sm:$0xff]
  %v30 = vld [vmem:[%s1 + $0x8] sm:$0xff]
  %v31 = vld [vmem:[%s1 + $0x10] sm:$0xff]
  %v32 = vld [vmem:[%s1 + $0x18] sm:$0xff]
  %v33 = vld [vmem:[%s1 + $0x20] sm:$0xff]
  %v34 = vld [vmem:[%s1 + $0x28] sm:$0xff]
  %v35 = vld [vmem:[%s1 + $0x30] sm:$0xff]
  %v36 = vld [vmem:[%s1 + $0x38] sm:$0xff]
  %v37 = vld [vmem:[%s1 + $0x40] sm:$0xff]
  %v38 = vld [vmem:[%s1 + $0x48] sm:$0xff]
  %v39 = vld [vmem:[%s1 + $0x50] sm:$0xff]
  %v40 = vld [vmem:[%s1 + $0x58] sm:$0xff]
  %v41 = vld [vmem:[%s1 + $0x60] sm:$0xff]
  %v42 = vld [vmem:[%s1 + $0x68] sm:$0xff]
  %v43 = vld [vmem:[%s1 + $0x70] sm:$0xff]
  %v44 = vld [vmem:[%s1 + $0x78] sm:$0xff]
  %46 = vset.pattern.permute.xlu0 0
  %47 = vperm.xlu0 %46, %v29
  %v48 = vpop.permute.xlu0 %47
  %51 = vset.pattern.permute.xlu0 0
  %52 = vperm.xlu0 %51, %v30
  %v53 = vpop.permute.xlu0 %52
  %56 = vset.pattern.permute.xlu0 0
  %57 = vperm.xlu0 %56, %v31
  %v58 = vpop.permute.xlu0 %57
  %61 = vset.pattern.permute.xlu0 0
  %62 = vperm.xlu0 %61, %v32
  %v63 = vpop.permute.xlu0 %62
  %66 = vset.pattern.permute.xlu0 0
  %67 = vperm.xlu0 %66, %v33
  %v68 = vpop.permute.xlu0 %67
  %71 = vset.pattern.permute.xlu0 0
  %72 = vperm.xlu0 %71, %v34
  %v73 = vpop.permute.xlu0 %72
  %76 = vset.pattern.permute.xlu0 0
  %77 = vperm.xlu0 %76, %v35
  %v78 = vpop.permute.xlu0 %77
  %81 = vset.pattern.permute.xlu0 0
  %82 = vperm.xlu0 %81, %v36
  %v83 = vpop.permute.xlu0 %82
  %86 = vset.pattern.permute.xlu0 0
  %87 = vperm.xlu0 %86, %v37
  %v88 = vpop.permute.xlu0 %87
  %91 = vset.pattern.permute.xlu0 0
  %92 = vperm.xlu0 %91, %v38
  %v93 = vpop.permute.xlu0 %92
  %96 = vset.pattern.permute.xlu0 0
  %97 = vperm.xlu0 %96, %v39
  %v98 = vpop.permute.xlu0 %97
  %101 = vset.pattern.permute.xlu0 0
  %102 = vperm.xlu0 %101, %v40
  %v103 = vpop.permute.xlu0 %102
  %106 = vset.pattern.permute.xlu0 0
  %107 = vperm.xlu0 %106, %v41
  %v108 = vpop.permute.xlu0 %107
  %111 = vset.pattern.permute.xlu0 0
  %112 = vperm.xlu0 %111, %v42
  %v113 = vpop.permute.xlu0 %112
  %116 = vset.pattern.permute.xlu0 0
  %117 = vperm.xlu0 %116, %v43
  %v118 = vpop.permute.xlu0 %117
  %121 = vset.pattern.permute.xlu0 0
  %122 = vperm.xlu0 %121, %v44
  %v123 = vpop.permute.xlu0 %122
  %v125 = vlaneseq
  %v126 = vshrl.u32 %v125, 7
  %v127 = vsub.s32 0, %v126
  %v128 = vrot.slane %v28, %v127
  %v129 = vmul.f32 %v48, %v128
  %v130 = vmul.f32 %v53, %v128
  %v131 = vmul.f32 %v58, %v128
  %v132 = vmul.f32 %v63, %v128
  %v133 = vmul.f32 %v68, %v128
  %v134 = vmul.f32 %v73, %v128
  %v135 = vmul.f32 %v78, %v128
  %v136 = vmul.f32 %v83, %v128
  %v137 = vmul.f32 %v88, %v128
  %v138 = vmul.f32 %v93, %v128
  %v139 = vmul.f32 %v98, %v128
  %v140 = vmul.f32 %v103, %v128
  %v141 = vmul.f32 %v108, %v128
  %v142 = vmul.f32 %v113, %v128
  %v143 = vmul.f32 %v118, %v128
  %v144 = vmul.f32 %v123, %v128
  %145 = vset.pattern.permute.xlu0 1
  %146 = vperm.xlu0 %145, %v29
  %v147 = vpop.permute.xlu0 %146
  %149 = vset.pattern.permute.xlu0 1
  %150 = vperm.xlu0 %149, %v30
  %v151 = vpop.permute.xlu0 %150
  %153 = vset.pattern.permute.xlu0 1
  %154 = vperm.xlu0 %153, %v31
  %v155 = vpop.permute.xlu0 %154
  %157 = vset.pattern.permute.xlu0 1
  %158 = vperm.xlu0 %157, %v32
  %v159 = vpop.permute.xlu0 %158
  %161 = vset.pattern.permute.xlu0 1
  %162 = vperm.xlu0 %161, %v33
  %v163 = vpop.permute.xlu0 %162
  %165 = vset.pattern.permute.xlu0 1
  %166 = vperm.xlu0 %165, %v34
  %v167 = vpop.permute.xlu0 %166
  %169 = vset.pattern.permute.xlu0 1
  %170 = vperm.xlu0 %169, %v35
  %v171 = vpop.permute.xlu0 %170
  %173 = vset.pattern.permute.xlu0 1
  %174 = vperm.xlu0 %173, %v36
  %v175 = vpop.permute.xlu0 %174
  %177 = vset.pattern.permute.xlu0 1
  %178 = vperm.xlu0 %177, %v37
  %v179 = vpop.permute.xlu0 %178
  %181 = vset.pattern.permute.xlu0 1
  %182 = vperm.xlu0 %181, %v38
  %v183 = vpop.permute.xlu0 %182
  %185 = vset.pattern.permute.xlu0 1
  %186 = vperm.xlu0 %185, %v39
  %v187 = vpop.permute.xlu0 %186
  %189 = vset.pattern.permute.xlu0 1
  %190 = vperm.xlu0 %189, %v40
  %v191 = vpop.permute.xlu0 %190
  %193 = vset.pattern.permute.xlu0 1
  %194 = vperm.xlu0 %193, %v41
  %v195 = vpop.permute.xlu0 %194
  %197 = vset.pattern.permute.xlu0 1
  %198 = vperm.xlu0 %197, %v42
  %v199 = vpop.permute.xlu0 %198
  %201 = vset.pattern.permute.xlu0 1
  %202 = vperm.xlu0 %201, %v43
  %v203 = vpop.permute.xlu0 %202
  %205 = vset.pattern.permute.xlu0 1
  %206 = vperm.xlu0 %205, %v44
  %v207 = vpop.permute.xlu0 %206
  %v209 = vlaneseq
  %v210 = vshrl.u32 %v209, 7
  %v211 = vsub.s32 1, %v210
  %v212 = vrot.slane %v28, %v211
  %v213 = vmul.f32 %v147, %v212
  %v214 = vmul.f32 %v151, %v212
  %v215 = vmul.f32 %v155, %v212
  %v216 = vmul.f32 %v159, %v212
  %v217 = vmul.f32 %v163, %v212
  %v218 = vmul.f32 %v167, %v212
  %v219 = vmul.f32 %v171, %v212
  %v220 = vmul.f32 %v175, %v212
  %v221 = vmul.f32 %v179, %v212
  %v222 = vmul.f32 %v183, %v212
  %v223 = vmul.f32 %v187, %v212
  %v224 = vmul.f32 %v191, %v212
  %v225 = vmul.f32 %v195, %v212
  %v226 = vmul.f32 %v199, %v212
  %v227 = vmul.f32 %v203, %v212
  %v228 = vmul.f32 %v207, %v212
  %v229 = vadd.f32 %v129, %v213
  %v230 = vadd.f32 %v130, %v214
  %v231 = vadd.f32 %v131, %v215
  %v232 = vadd.f32 %v132, %v216
  %v233 = vadd.f32 %v133, %v217
  %v234 = vadd.f32 %v134, %v218
  %v235 = vadd.f32 %v135, %v219
  %v236 = vadd.f32 %v136, %v220
  %v237 = vadd.f32 %v137, %v221
  %v238 = vadd.f32 %v138, %v222
  %v239 = vadd.f32 %v139, %v223
  %v240 = vadd.f32 %v140, %v224
  %v241 = vadd.f32 %v141, %v225
  %v242 = vadd.f32 %v142, %v226
  %v243 = vadd.f32 %v143, %v227
  %v244 = vadd.f32 %v144, %v228
  %v245 = vld [vmem:[%s2] sm:$0xff]
  %v246 = vld [vmem:[%s2 + $0x8] sm:$0xff]
  %v247 = vld [vmem:[%s2 + $0x10] sm:$0xff]
  %v248 = vld [vmem:[%s2 + $0x18] sm:$0xff]
  %v249 = vld [vmem:[%s2 + $0x20] sm:$0xff]
  %v250 = vld [vmem:[%s2 + $0x28] sm:$0xff]
  %v251 = vld [vmem:[%s2 + $0x30] sm:$0xff]
  %v252 = vld [vmem:[%s2 + $0x38] sm:$0xff]
  %v253 = vld [vmem:[%s2 + $0x40] sm:$0xff]
  %v254 = vld [vmem:[%s2 + $0x48] sm:$0xff]
  %v255 = vld [vmem:[%s2 + $0x50] sm:$0xff]
  %v256 = vld [vmem:[%s2 + $0x58] sm:$0xff]
  %v257 = vld [vmem:[%s2 + $0x60] sm:$0xff]
  %v258 = vld [vmem:[%s2 + $0x68] sm:$0xff]
  %v259 = vld [vmem:[%s2 + $0x70] sm:$0xff]
  %v260 = vld [vmem:[%s2 + $0x78] sm:$0xff]
  %262 = vset.pattern.permute.xlu0 0
  %263 = vperm.xlu0 %262, %v245
  %v264 = vpop.permute.xlu0 %263
  %267 = vset.pattern.permute.xlu0 0
  %268 = vperm.xlu0 %267, %v246
  %v269 = vpop.permute.xlu0 %268
  %272 = vset.pattern.permute.xlu0 0
  %273 = vperm.xlu0 %272, %v247
  %v274 = vpop.permute.xlu0 %273
  %277 = vset.pattern.permute.xlu0 0
  %278 = vperm.xlu0 %277, %v248
  %v279 = vpop.permute.xlu0 %278
  %282 = vset.pattern.permute.xlu0 0
  %283 = vperm.xlu0 %282, %v249
  %v284 = vpop.permute.xlu0 %283
  %287 = vset.pattern.permute.xlu0 0
  %288 = vperm.xlu0 %287, %v250
  %v289 = vpop.permute.xlu0 %288
  %292 = vset.pattern.permute.xlu0 0
  %293 = vperm.xlu0 %292, %v251
  %v294 = vpop.permute.xlu0 %293
  %297 = vset.pattern.permute.xlu0 0
  %298 = vperm.xlu0 %297, %v252
  %v299 = vpop.permute.xlu0 %298
  %302 = vset.pattern.permute.xlu0 0
  %303 = vperm.xlu0 %302, %v253
  %v304 = vpop.permute.xlu0 %303
  %307 = vset.pattern.permute.xlu0 0
  %308 = vperm.xlu0 %307, %v254
  %v309 = vpop.permute.xlu0 %308
  %312 = vset.pattern.permute.xlu0 0
  %313 = vperm.xlu0 %312, %v255
  %v314 = vpop.permute.xlu0 %313
  %317 = vset.pattern.permute.xlu0 0
  %318 = vperm.xlu0 %317, %v256
  %v319 = vpop.permute.xlu0 %318
  %322 = vset.pattern.permute.xlu0 0
  %323 = vperm.xlu0 %322, %v257
  %v324 = vpop.permute.xlu0 %323
  %327 = vset.pattern.permute.xlu0 0
  %328 = vperm.xlu0 %327, %v258
  %v329 = vpop.permute.xlu0 %328
  %332 = vset.pattern.permute.xlu0 0
  %333 = vperm.xlu0 %332, %v259
  %v334 = vpop.permute.xlu0 %333
  %337 = vset.pattern.permute.xlu0 0
  %338 = vperm.xlu0 %337, %v260
  %v339 = vpop.permute.xlu0 %338
  %v341 = vadd.f32 %v229, %v264
  %v342 = vadd.f32 %v230, %v269
  %v343 = vadd.f32 %v231, %v274
  %v344 = vadd.f32 %v232, %v279
  %v345 = vadd.f32 %v233, %v284
  %v346 = vadd.f32 %v234, %v289
  %v347 = vadd.f32 %v235, %v294
  %v348 = vadd.f32 %v236, %v299
  %v349 = vadd.f32 %v237, %v304
  %v350 = vadd.f32 %v238, %v309
  %v351 = vadd.f32 %v239, %v314
  %v352 = vadd.f32 %v240, %v319
  %v353 = vadd.f32 %v241, %v324
  %v354 = vadd.f32 %v242, %v329
  %v355 = vadd.f32 %v243, %v334
  %v356 = vadd.f32 %v244, %v339
  %v357 = vmax.f32 %v341, 0.0
  %v358 = vmax.f32 %v342, 0.0
  %v359 = vmax.f32 %v343, 0.0
  %v360 = vmax.f32 %v344, 0.0
  %v361 = vmax.f32 %v345, 0.0
  %v362 = vmax.f32 %v346, 0.0
  %v363 = vmax.f32 %v347, 0.0
  %v364 = vmax.f32 %v348, 0.0
  %v365 = vmax.f32 %v349, 0.0
  %v366 = vmax.f32 %v350, 0.0
  %v367 = vmax.f32 %v351, 0.0
  %v368 = vmax.f32 %v352, 0.0
  %v369 = vmax.f32 %v353, 0.0
  %v370 = vmax.f32 %v354, 0.0
  %v371 = vmax.f32 %v355, 0.0
  %v372 = vmax.f32 %v356, 0.0
  %v373 = vld [vmem:[%s3] sm:$0xff]
  %v374 = vld [vmem:[%s3 + $0x8] sm:$0xff]
  %v375 = vld [vmem:[%s3 + $0x10] sm:$0xff]
  %v376 = vld [vmem:[%s3 + $0x18] sm:$0xff]
  %v377 = vld [vmem:[%s3 + $0x20] sm:$0xff]
  %v378 = vld [vmem:[%s3 + $0x28] sm:$0xff]
  %v379 = vld [vmem:[%s3 + $0x30] sm:$0xff]
  %v380 = vld [vmem:[%s3 + $0x38] sm:$0xff]
  %v381 = vld [vmem:[%s4] sm:$0xff]
  %v382 = vld [vmem:[%s4 + $0x8] sm:$0xff]
  %v383 = vld [vmem:[%s4 + $0x10] sm:$0xff]
  %v384 = vld [vmem:[%s4 + $0x18] sm:$0xff]
  %v385 = vld [vmem:[%s4 + $0x20] sm:$0xff]
  %v386 = vld [vmem:[%s4 + $0x28] sm:$0xff]
  %v387 = vld [vmem:[%s4 + $0x30] sm:$0xff]
  %v388 = vld [vmem:[%s4 + $0x38] sm:$0xff]
  %390 = vset.pattern.permute.xlu0 0
  %391 = vperm.xlu0 %390, %v381
  %v392 = vpop.permute.xlu0 %391
  %395 = vset.pattern.permute.xlu0 0
  %396 = vperm.xlu0 %395, %v382
  %v397 = vpop.permute.xlu0 %396
  %400 = vset.pattern.permute.xlu0 0
  %401 = vperm.xlu0 %400, %v383
  %v402 = vpop.permute.xlu0 %401
  %405 = vset.pattern.permute.xlu0 0
  %406 = vperm.xlu0 %405, %v384
  %v407 = vpop.permute.xlu0 %406
  %410 = vset.pattern.permute.xlu0 0
  %411 = vperm.xlu0 %410, %v385
  %v412 = vpop.permute.xlu0 %411
  %415 = vset.pattern.permute.xlu0 0
  %416 = vperm.xlu0 %415, %v386
  %v417 = vpop.permute.xlu0 %416
  %420 = vset.pattern.permute.xlu0 0
  %421 = vperm.xlu0 %420, %v387
  %v422 = vpop.permute.xlu0 %421
  %425 = vset.pattern.permute.xlu0 0
  %426 = vperm.xlu0 %425, %v388
  %v427 = vpop.permute.xlu0 %426
  %429 = vmatprep.subr.mxu0 0.0
  %430 = vmatpush1.msra.mxu0 %v357
  %431 = vmatprep.subr.mxu0 0.0
  %432 = vmatpush1.msra.mxu0 %v358
  %433 = vmatprep.subr.mxu0 0.0
  %434 = vmatpush1.msra.mxu0 %v359
  %435 = vmatprep.subr.mxu0 0.0
  %436 = vmatpush1.msra.mxu0 %v360
  %437 = vmatprep.subr.mxu0 0.0
  %438 = vmatpush1.msra.mxu0 %v361
  %439 = vmatprep.subr.mxu0 0.0
  %440 = vmatpush1.msra.mxu0 %v362
  %441 = vmatprep.subr.mxu0 0.0
  %442 = vmatpush1.msra.mxu0 %v363
  %443 = vmatprep.subr.mxu0 0.0
  %444 = vmatpush1.msra.mxu0 %v364
  %445 = vmatprep.subr.mxu0 0.0
  %446 = vmatpush1.msra.mxu0 %v365
  %447 = vmatprep.subr.mxu0 0.0
  %448 = vmatpush1.msra.mxu0 %v366
  %449 = vmatprep.subr.mxu0 0.0
  %450 = vmatpush1.msra.mxu0 %v367
  %451 = vmatprep.subr.mxu0 0.0
  %452 = vmatpush1.msra.mxu0 %v368
  %453 = vmatprep.subr.mxu0 0.0
  %454 = vmatpush1.msra.mxu0 %v369
  %455 = vmatprep.subr.mxu0 0.0
  %456 = vmatpush1.msra.mxu0 %v370
  %457 = vmatprep.subr.mxu0 0.0
  %458 = vmatpush1.msra.mxu0 %v371
  %459 = vmatprep.subr.mxu0 0.0
  %460 = vmatpush1.msra.mxu0 %v372
  %461 = vmatprep.subr.mxu0 0.0
  %462 = vmatpush1.msra.mxu0 0.0
  %463 = vmatprep.subr.mxu0 0.0
  %464 = vmatpush1.msra.mxu0 0.0
  %465 = vmatprep.subr.mxu0 0.0
  %466 = vmatpush1.msra.mxu0 0.0
  %467 = vmatprep.subr.mxu0 0.0
  %468 = vmatpush1.msra.mxu0 0.0
  %469 = vmatprep.subr.mxu0 0.0
  %470 = vmatpush1.msra.mxu0 0.0
  %471 = vmatprep.subr.mxu0 0.0
  %472 = vmatpush1.msra.mxu0 0.0
  %473 = vmatprep.subr.mxu0 0.0
  %474 = vmatpush1.msra.mxu0 0.0
  %475 = vmatprep.subr.mxu0 0.0
  %476 = vmatpush1.msra.mxu0 0.0
  %477 = vmatprep.subr.mxu0 0.0
  %478 = vmatpush1.msra.mxu0 0.0
  %479 = vmatprep.subr.mxu0 0.0
  %480 = vmatpush1.msra.mxu0 0.0
  %481 = vmatprep.subr.mxu0 0.0
  %482 = vmatpush1.msra.mxu0 0.0
  %483 = vmatprep.subr.mxu0 0.0
  %484 = vmatpush1.msra.mxu0 0.0
  %485 = vmatprep.subr.mxu0 0.0
  %486 = vmatpush1.msra.mxu0 0.0
  %487 = vmatprep.subr.mxu0 0.0
  %488 = vmatpush1.msra.mxu0 0.0
  %489 = vmatprep.subr.mxu0 0.0
  %490 = vmatpush1.msra.mxu0 0.0
  %491 = vmatprep.subr.mxu0 0.0
  %492 = vmatpush1.msra.mxu0 0.0
  %493 = vmatprep.mubr.f32.mxu0 0.0
  %494 = vmatmul.mubr.f32.gmra.mrb[0].mxu0 %v373
  %v495 = vpop.f32.mrb[0].mxu0
  %v496 = vadd.f32 %v392, %v495
  %v497 = vpop.f32.mrb[0].mxu0
  %498 = vmatprep.mubr.f32.mxu0 0.0
  %499 = vmatmul.mubr.f32.gmra.mrb[0].mxu0 %v374
  %v500 = vpop.f32.mrb[0].mxu0
  %v501 = vadd.f32 %v397, %v500
  %v502 = vpop.f32.mrb[0].mxu0
  %503 = vmatprep.mubr.f32.mxu0 0.0
  %504 = vmatmul.mubr.f32.gmra.mrb[0].mxu0 %v375
  %v505 = vpop.f32.mrb[0].mxu0
  %v506 = vadd.f32 %v402, %v505
  %v507 = vpop.f32.mrb[0].mxu0
  %508 = vmatprep.mubr.f32.mxu0 0.0
  %509 = vmatmul.mubr.f32.gmra.mrb[0].mxu0 %v376
  %v510 = vpop.f32.mrb[0].mxu0
  %v511 = vadd.f32 %v407, %v510
  %v512 = vpop.f32.mrb[0].mxu0
  %513 = vmatprep.mubr.f32.mxu0 0.0
  %514 = vmatmul.mubr.f32.gmra.mrb[0].mxu0 %v377
  %v515 = vpop.f32.mrb[0].mxu0
  %v516 = vadd.f32 %v412, %v515
  %v517 = vpop.f32.mrb[0].mxu0
  %518 = vmatprep.mubr.f32.mxu0 0.0
  %519 = vmatmul.mubr.f32.gmra.mrb[0].mxu0 %v378
  %v520 = vpop.f32.mrb[0].mxu0
  %v521 = vadd.f32 %v417, %v520
  %v522 = vpop.f32.mrb[0].mxu0
  %523 = vmatprep.mubr.f32.mxu0 0.0
  %524 = vmatmul.mubr.f32.gmra.mrb[0].mxu0 %v379
  %v525 = vpop.f32.mrb[0].mxu0
  %v526 = vadd.f32 %v422, %v525
  %v527 = vpop.f32.mrb[0].mxu0
  %528 = vmatprep.mubr.f32.mxu0 0.0
  %529 = vmatmul.mubr.f32.gmra.mrb[0].mxu0 %v380
  %v530 = vpop.f32.mrb[0].mxu0
  %v531 = vadd.f32 %v427, %v530
  %v532 = vpop.f32.mrb[0].mxu0
  %533 = vdwg.mxu0
  %v534 = vmax.f32 %v496, 0.0
  %v535 = vmax.f32 %v501, 0.0
  %v536 = vmax.f32 %v506, 0.0
  %v537 = vmax.f32 %v511, 0.0
  %v538 = vmax.f32 %v516, 0.0
  %v539 = vmax.f32 %v521, 0.0
  %v540 = vmax.f32 %v526, 0.0
  %v541 = vmax.f32 %v531, 0.0
  %v542 = vld [vmem:[%s5] sm:$0x1]
  %v543 = vld [vmem:[#allocation2] sm:$0x1]
  %545 = vset.pattern.permute.xlu0 0
  %546 = vperm.xlu0 %545, %v543
  %v547 = vpop.permute.xlu0 %546
  %v549 = vlaneseq
  %v550 = vshrl.u32 %v549, 7
  %v551 = vsub.s32 0, %v550
  %v552 = vrot.slane %v547, %v551
  %vm553 = vcmask 523264
  %v555 = vsel %vm553, %v542, 0
  %557 = vmatprep.subr.mxu0 0.0
  %558 = vmatpush1.msra.mxu0 %v534
  %559 = vmatprep.subr.mxu0 0.0
  %560 = vmatpush1.msra.mxu0 %v535
  %561 = vmatprep.subr.mxu0 0.0
  %562 = vmatpush1.msra.mxu0 %v536
  %563 = vmatprep.subr.mxu0 0.0
  %564 = vmatpush1.msra.mxu0 %v537
  %565 = vmatprep.subr.mxu0 0.0
  %566 = vmatpush1.msra.mxu0 %v538
  %567 = vmatprep.subr.mxu0 0.0
  %568 = vmatpush1.msra.mxu0 %v539
  %569 = vmatprep.subr.mxu0 0.0
  %570 = vmatpush1.msra.mxu0 %v540
  %571 = vmatprep.subr.mxu0 0.0
  %572 = vmatpush1.msra.mxu0 %v541
  %573 = vmatprep.subr.mxu0 0.0
  %574 = vmatpush1.msra.mxu0 0.0
  %575 = vmatprep.subr.mxu0 0.0
  %576 = vmatpush1.msra.mxu0 0.0
  %577 = vmatprep.subr.mxu0 0.0
  %578 = vmatpush1.msra.mxu0 0.0
  %579 = vmatprep.subr.mxu0 0.0
  %580 = vmatpush1.msra.mxu0 0.0
  %581 = vmatprep.subr.mxu0 0.0
  %582 = vmatpush1.msra.mxu0 0.0
  %583 = vmatprep.subr.mxu0 0.0
  %584 = vmatpush1.msra.mxu0 0.0
  %585 = vmatprep.subr.mxu0 0.0
  %586 = vmatpush1.msra.mxu0 0.0
  %587 = vmatprep.subr.mxu0 0.0
  %588 = vmatpush1.msra.mxu0 0.0
  %589 = vmatprep.subr.mxu0 0.0
  %590 = vmatpush1.msra.mxu0 0.0
  %591 = vmatprep.subr.mxu0 0.0
  %592 = vmatpush1.msra.mxu0 0.0
  %593 = vmatprep.subr.mxu0 0.0
  %594 = vmatpush1.msra.mxu0 0.0
  %595 = vmatprep.subr.mxu0 0.0
  %596 = vmatpush1.msra.mxu0 0.0
  %597 = vmatprep.subr.mxu0 0.0
  %598 = vmatpush1.msra.mxu0 0.0
  %599 = vmatprep.subr.mxu0 0.0
  %600 = vmatpush1.msra.mxu0 0.0
  %601 = vmatprep.subr.mxu0 0.0
  %602 = vmatpush1.msra.mxu0 0.0
  %603 = vmatprep.subr.mxu0 0.0
  %604 = vmatpush1.msra.mxu0 0.0
  %605 = vmatprep.subr.mxu0 0.0
  %606 = vmatpush1.msra.mxu0 0.0
  %607 = vmatprep.subr.mxu0 0.0
  %608 = vmatpush1.msra.mxu0 0.0
  %609 = vmatprep.subr.mxu0 0.0
  %610 = vmatpush1.msra.mxu0 0.0
  %611 = vmatprep.subr.mxu0 0.0
  %612 = vmatpush1.msra.mxu0 0.0
  %613 = vmatprep.subr.mxu0 0.0
  %614 = vmatpush1.msra.mxu0 0.0
  %615 = vmatprep.subr.mxu0 0.0
  %616 = vmatpush1.msra.mxu0 0.0
  %617 = vmatprep.subr.mxu0 0.0
  %618 = vmatpush1.msra.mxu0 0.0
  %619 = vmatprep.subr.mxu0 0.0
  %620 = vmatpush1.msra.mxu0 0.0
  %621 = vmatprep.mubr.f32.mxu0 0.0
  %622 = vmatmul.mubr.f32.gmra.mrb[0].mxu0 %v555
  %v623 = vpop.f32.mrb[0].mxu0
  %v624 = vadd.f32 %v552, %v623
  %v625 = vpop.f32.mrb[0].mxu0
  %626 = vdwg.mxu0
  %627 = vst [vmem:[%s7] sm:$0x1] %v624
  // Predicated region
  $region30: #{mlp_regressor_forward.1} parent=0 // pred_check
    _
  $region31: #{mlp_regressor_forward.1} parent=0 // pred_check_branch
    %629 = sbr.rel (0) target = $region33
  $region32: #{mlp_regressor_forward.1} parent=0 // pred_region
    _
  $region33: #{mlp_regressor_forward.1} parent=0 // pred_fallthru
    _
  // Predicated region
  $region34: #{mlp_regressor_forward.1} parent=0 // pred_check
    _
  $region35: #{mlp_regressor_forward.1} parent=0 // pred_check_branch
    %631 = sbr.rel (0) target = $region37
  $region36: #{mlp_regressor_forward.1} parent=0 // pred_region
    _
  $region37: #{mlp_regressor_forward.1} parent=0 // pred_fallthru
    _

</llo_original>
